<compile_context>
chip_gen: v7x
topology: tpu7x:2x2x1
jax: 0.10.0
libtpu: 0.0.40
codegen_flags: <defaults>
</compile_context>

<pallas_src>
import functools

import jax
import jax.numpy as jnp
from jax.experimental import pallas as pl
from jax.experimental.pallas import tpu as pltpu

LANE = 128            # TPU lane width (last-dim tiling granularity).
SUBLANE = 8           # f32 sublane width (second-to-last-dim granularity).
MIN_SPLIT_ROWS = 128  # split the batch into >=2 tiles (v7x megacore) above 2x this.
HID_TRUE = 16         # true hidden width after the layer1@layer2 fold (layer2 out).


def _round_up(n: int, m: int) -> int:
    return ((n + m - 1) // m) * m


# ---------------------------------------------------------------------------
# Kernel: one batch tile per grid step, weights resident in VMEM.
#   h = relu(x @ W12 + b12)   (bm, 128)  -- lane-dense MXU tile
#   y = h @ W3 + b3           (bm, 8)    -- true-width result, narrow store
# ---------------------------------------------------------------------------
def mlp_kernel(x_ref, w12_ref, b12_ref, w3_ref, b3_ref, o_ref):
    h = jnp.dot(x_ref[...], w12_ref[...], preferred_element_type=jnp.float32)
    h = jnp.maximum(h + b12_ref[...], 0.0)          # bias + ReLU on the VPU (free)
    y = jnp.dot(h, w3_ref[...], preferred_element_type=jnp.float32) + b3_ref[...]
    o_ref[...] = y.astype(o_ref.dtype)


# ---------------------------------------------------------------------------
# One-time parameter preparation (fold + lane-pad the hidden dim only).
# Do this at init, not per call.
# ---------------------------------------------------------------------------
def fold_and_pad_params(params):
    """(W1,b1,W2,b2,W3,b3) with W stored (in, out) -> (W12p, b12p, W3p, b3p)."""
    w1, b1, w2, b2, w3, b3 = params
    hp = jax.lax.Precision.HIGHEST
    # Fold the two consecutive bias-only linears (no activation between them).
    w12 = jnp.dot(w1, w2, precision=hp)                          # (in, 16)
    b12 = jnp.dot(b1.reshape(1, -1), w2, precision=hp) + b2.reshape(1, -1)
    hid = w12.shape[1]
    hid_p = _round_up(hid, LANE)                                 # 16 -> 128
    # Zero-pad the hidden lane dim to 128 (lane-dense MXU tiles; pad lanes stay 0).
    w12p = jnp.zeros((w12.shape[0], hid_p), w12.dtype).at[:, :hid].set(w12)
    b12p = jnp.zeros((1, hid_p), b12.dtype).at[:, :hid].set(b12)
    # layer3: pad rows to hid_p, keep TRUE output width (narrow writeback).
    w3p = jnp.zeros((hid_p, w3.shape[1]), w3.dtype).at[:hid, :].set(w3)
    b3p = b3.reshape(1, -1)
    return w12p, b12p, w3p, b3p


# ---------------------------------------------------------------------------
# Wrapper: grid over batch, resident weights, true-width output.
# ---------------------------------------------------------------------------
@functools.partial(jax.jit, static_argnames=("block_m",))
def two_layers_forward(x, folded_params, block_m=1024):
    w12p, b12p, w3p, b3p = folded_params
    batch, in_features = x.shape
    hid_p = w12p.shape[1]
    out_features = w3p.shape[1]

    # Only sublane-align the batch (<=7 pad rows, and only when ragged); no full-tile pad.
    batch_a = _round_up(batch, SUBLANE)
    if batch_a != batch:
        x = jnp.pad(x, ((0, batch_a - batch), (0, 0)))

    # Tile selection: as large as possible (cheap per-step overhead), but keep >=2
    # tiles when there is enough work so "parallel" shards across v7x's two TCs.
    if batch_a >= 2 * MIN_SPLIT_ROWS:
        n_tiles = max(2, pl.cdiv(batch_a, block_m))
    else:
        n_tiles = 1
    bm = _round_up(pl.cdiv(batch_a, n_tiles), SUBLANE)
    grid = (pl.cdiv(batch_a, bm),)

    # Cost estimate from the TRUE (unpadded) folded dims.
    flops = 2 * batch * (in_features * HID_TRUE + HID_TRUE * out_features)
    bytes_accessed = 4 * (batch * in_features
                          + in_features * HID_TRUE + HID_TRUE
                          + HID_TRUE * out_features + out_features
                          + batch * out_features)

    y = pl.pallas_call(
        mlp_kernel,
        out_shape=jax.ShapeDtypeStruct((batch_a, out_features), x.dtype),
        grid=grid,
        in_specs=[
            pl.BlockSpec((bm, in_features), lambda i: (i, 0)),     # x: streamed
            pl.BlockSpec((in_features, hid_p), lambda i: (0, 0)),  # W12: resident
            pl.BlockSpec((1, hid_p), lambda i: (0, 0)),            # b12: resident
            pl.BlockSpec((hid_p, out_features), lambda i: (0, 0)), # W3: resident
            pl.BlockSpec((1, out_features), lambda i: (0, 0)),     # b3: resident
        ],
        out_specs=pl.BlockSpec((bm, out_features), lambda i: (i, 0)),
        compiler_params=pltpu.CompilerParams(
            dimension_semantics=("parallel",),    # megacore split on v7x
        ),
        cost_estimate=pl.CostEstimate(
            flops=flops, transcendentals=0, bytes_accessed=bytes_accessed),
    )(x, w12p, b12p, w3p, b3p)

    # No-op when batch was already 8-row aligned (the common case).
    return y if batch_a == batch else y[:batch]


# ---------------------------------------------------------------------------
# Reference (unfused, mirrors the PyTorch module) + deterministic init.
# ---------------------------------------------------------------------------
def init_params(key, input_size, hidden_size, output_size, dtype=jnp.float32):
    ks = jax.random.split(key, 6)
    w1 = jax.random.normal(ks[0], (input_size, hidden_size), dtype) * 0.1
    b1 = jax.random.normal(ks[1], (hidden_size,), dtype) * 0.1
    w2 = jax.random.normal(ks[2], (hidden_size, 16), dtype) * 0.1
    b2 = jax.random.normal(ks[3], (16,), dtype) * 0.1
    w3 = jax.random.normal(ks[4], (16, output_size), dtype) * 0.1
    b3 = jax.random.normal(ks[5], (output_size,), dtype) * 0.1
    return (w1, b1, w2, b2, w3, b3)


def reference_forward(x, params):
    w1, b1, w2, b2, w3, b3 = params
    h1 = x @ w1 + b1
    h2 = h1 @ w2 + b2
    return jnp.maximum(h2, 0.0) @ w3 + b3


if __name__ == "__main__":
    input_size, hidden_size, output_size = 32, 64, 8

    key = jax.random.PRNGKey(0)
    kx, kp = jax.random.split(key)
    params = init_params(kp, input_size, hidden_size, output_size)
    folded = fold_and_pad_params(params)

    # Main check: batch large enough to exercise the multi-tile (megacore) path.
    batch = 512
    x = jax.random.normal(kx, (batch, input_size), jnp.float32)
    y = two_layers_forward(x, folded)
    jax.block_until_ready(y)
    y_ref = reference_forward(x, params)
    assert y.shape == (batch, output_size)
    # The layer1/layer2 fold reassociates f32 sums -> allow a small tolerance.
    assert jnp.allclose(y, y_ref, atol=1e-4, rtol=1e-4)

    # Tiny batch check (single-tile path).
    x_small = jax.random.normal(jax.random.PRNGKey(1), (8, input_size), jnp.float32)
    y_small = two_layers_forward(x_small, folded)
    jax.block_until_ready(y_small)
    assert jnp.allclose(y_small, reference_forward(x_small, params),
                        atol=1e-4, rtol=1e-4)

    print("KERNEL_OK")
</pallas_src>

<mosaic_0001>
module attributes {stable_mosaic.version = 11 : i64} {
  func.func @mlp_kernel(%arg0: i32, %arg1: memref<256x32xf32, #tpu.memory_space<vmem>>, %arg2: memref<32x128xf32, #tpu.memory_space<vmem>>, %arg3: memref<1x128xf32, #tpu.memory_space<vmem>>, %arg4: memref<128x8xf32, #tpu.memory_space<vmem>>, %arg5: memref<1x8xf32, #tpu.memory_space<vmem>>, %arg6: memref<256x8xf32, #tpu.memory_space<vmem>>) attributes {dimension_semantics = [#tpu.dimension_semantics<parallel>], iteration_bounds = array<i64: 2>, scalar_prefetch = 0 : i64, scratch_operands = 0 : i64, tpu.core_type = #tpu.core_type<tc>, window_params = [{transform_indices = @transform_0, window_bounds = array<i64: 256, 32>}, {pipeline_mode = #tpu.pipeline_mode<synchronous>, transform_indices = @transform_1, window_bounds = array<i64: 32, 128>}, {pipeline_mode = #tpu.pipeline_mode<synchronous>, transform_indices = @transform_2, window_bounds = array<i64: 1, 128>}, {pipeline_mode = #tpu.pipeline_mode<synchronous>, transform_indices = @transform_3, window_bounds = array<i64: 128, 8>}, {pipeline_mode = #tpu.pipeline_mode<synchronous>, transform_indices = @transform_4, window_bounds = array<i64: 1, 8>}, {transform_indices = @transform_5, window_bounds = array<i64: 256, 8>}]} {
    %c0 = arith.constant 0 : index
    %c0_0 = arith.constant 0 : index
    %0 = vector.load %arg1[%c0, %c0_0] : memref<256x32xf32, #tpu.memory_space<vmem>>, vector<256x32xf32>
    %c0_1 = arith.constant 0 : index
    %c0_2 = arith.constant 0 : index
    %1 = vector.load %arg2[%c0_1, %c0_2] : memref<32x128xf32, #tpu.memory_space<vmem>>, vector<32x128xf32>
    %cst = arith.constant dense<0.000000e+00> : vector<256x128xf32>
    %2 = tpu.matmul %0, %1, %cst {dimension_numbers = #tpu.dot_dimension_numbers<[1], [0], [0], [1], [0, 0, 1, 1], [], []>} : vector<256x32xf32>, vector<32x128xf32>, vector<256x128xf32> -> vector<256x128xf32>
    %c0_3 = arith.constant 0 : index
    %c0_4 = arith.constant 0 : index
    %3 = vector.load %arg3[%c0_3, %c0_4] : memref<1x128xf32, #tpu.memory_space<vmem>>, vector<1x128xf32>
    %4 = vector.broadcast %3 : vector<1x128xf32> to vector<256x128xf32>
    %5 = arith.addf %2, %4 : vector<256x128xf32>
    %cst_5 = arith.constant 0.000000e+00 : f32
    %6 = vector.broadcast %cst_5 : f32 to vector<256x128xf32>
    %7 = arith.maximumf %5, %6 : vector<256x128xf32>
    %c0_6 = arith.constant 0 : index
    %c0_7 = arith.constant 0 : index
    %8 = vector.load %arg4[%c0_6, %c0_7] : memref<128x8xf32, #tpu.memory_space<vmem>>, vector<128x8xf32>
    %cst_8 = arith.constant dense<0.000000e+00> : vector<256x8xf32>
    %9 = tpu.matmul %7, %8, %cst_8 {dimension_numbers = #tpu.dot_dimension_numbers<[1], [0], [0], [1], [0, 0, 1, 1], [], []>} : vector<256x128xf32>, vector<128x8xf32>, vector<256x8xf32> -> vector<256x8xf32>
    %c0_9 = arith.constant 0 : index
    %c0_10 = arith.constant 0 : index
    %10 = vector.load %arg5[%c0_9, %c0_10] : memref<1x8xf32, #tpu.memory_space<vmem>>, vector<1x8xf32>
    %11 = vector.broadcast %10 : vector<1x8xf32> to vector<256x8xf32>
    %12 = arith.addf %9, %11 : vector<256x8xf32>
    %c0_11 = arith.constant 0 : index
    %c0_12 = arith.constant 0 : index
    %13 = vector.load %arg6[%c0_11, %c0_12] : memref<256x8xf32, #tpu.memory_space<vmem>>, vector<256x8xf32>
    tpu.vector_store %arg6[%c0_11, %c0_12], %12 {strides = array<i32>} : memref<256x8xf32, #tpu.memory_space<vmem>>, vector<256x8xf32>,
    return
  }
  func.func @transform_0(%arg0: i32) -> (i32, i32) {
    %c0_i32 = arith.constant 0 : i32
    %c0_i32_0 = arith.constant 0 : i32
    return %arg0, %c0_i32 : i32, i32
  }
  func.func @transform_1(%arg0: i32) -> (i32, i32) {
    %c0_i32 = arith.constant 0 : i32
    %c0_i32_0 = arith.constant 0 : i32
    %c0_i32_1 = arith.constant 0 : i32
    return %c0_i32, %c0_i32_0 : i32, i32
  }
  func.func @transform_2(%arg0: i32) -> (i32, i32) {
    %c0_i32 = arith.constant 0 : i32
    %c0_i32_0 = arith.constant 0 : i32
    %c0_i32_1 = arith.constant 0 : i32
    return %c0_i32, %c0_i32_0 : i32, i32
  }
  func.func @transform_3(%arg0: i32) -> (i32, i32) {
    %c0_i32 = arith.constant 0 : i32
    %c0_i32_0 = arith.constant 0 : i32
    %c0_i32_1 = arith.constant 0 : i32
    return %c0_i32, %c0_i32_0 : i32, i32
  }
  func.func @transform_4(%arg0: i32) -> (i32, i32) {
    %c0_i32 = arith.constant 0 : i32
    %c0_i32_0 = arith.constant 0 : i32
    %c0_i32_1 = arith.constant 0 : i32
    return %c0_i32, %c0_i32_0 : i32, i32
  }
  func.func @transform_5(%arg0: i32) -> (i32, i32) {
    %c0_i32 = arith.constant 0 : i32
    %c0_i32_0 = arith.constant 0 : i32
    return %arg0, %c0_i32 : i32, i32
  }
}

</mosaic_0001>

<llo_original>
// kernel: two_layers_forward.1
$region0: #{two_layers_forward.1}
  #allocation0 [shape = 'u32[]', space=smem, size = 0x4, offset = 0x4, fixed_abs, tag = 'smem constant byte address 0x4 - core index']
  #allocation1 [shape = 'u32[144,128]{1,0:T(1,128)}', space=vmem, size = 0x12000, scoped, tag = 'internal scratch']
  %s0 = inlined_call_operand.vmem [shape: f32[512,32], index: 0, kind: input, shape index: {}]
  %s1 = inlined_call_operand.vmem [shape: f32[32,128], index: 1, kind: input, shape index: {}]
  %s2 = inlined_call_operand.vmem [shape: f32[1,128], index: 2, kind: input, shape index: {}]
  %s3 = inlined_call_operand.vmem [shape: f32[128,8], index: 3, kind: input, shape index: {}]
  %s4 = inlined_call_operand.vmem [shape: f32[1,8], index: 4, kind: input, shape index: {}]
  %s5 = inlined_call_operand.vmem [shape: f32[512,8], index: 5, kind: output, shape index: {}]
  %s6 = sld [smem:[#allocation0]]
  $region53: #{two_layers_forward.1} parent=0
    _
  %s8 = ssub.s32 1, %s6
  %s9 = scalar_select 0, %s8, %s6
  loop: start=0, step=1, limit=4
  $region2: #{two_layers_forward.1} parent=0 // loop_pre_header
    _
  $region3: #{two_layers_forward.1} parent=0 // loop_header
    %s11 = sphi 0, %s15
    %p12 = scmp.ge.s32.totalorder %s11, 4
    %s21 = sphi 0, %s23
    %s24 = sphi 0, %s21
    %s25 = sphi 0, %s24
    %s41 = sphi 0, %s25
    %s45 = sphi 0, %s45
    %s47 = sphi 0, %s45
    %s48 = sphi 0, %s47
    %s62 = sphi 0, %s48
    %s66 = sphi 0, %s66
    %s68 = sphi 0, %s66
    %s69 = sphi 0, %s68
    %s83 = sphi 0, %s69
    %s87 = sphi 0, %s87
    %s89 = sphi 0, %s87
    %s90 = sphi 0, %s89
    %s104 = sphi 0, %s90
    %s108 = sphi 0, %s108
    %s110 = sphi 0, %s108
    %s111 = sphi 0, %s110
    %s125 = sphi 0, %s111
    %s131 = sphi 0, %s133
    %s134 = sphi 0, %s131
    %s135 = sphi 0, %s134
    %s151 = sphi 0, %s135
  $region4: #{two_layers_forward.1} parent=0 // loop_header_branch
    %14 = sbr.rel (%p12) target = $region8
  $region5: #{two_layers_forward.1} parent=0 // loop_body
    %s16 = ssub.s32 %s11, 1
    %s17 = ssub.s32 %s11, 2
    %s18 = sadd.s32 %s11, 1
    %s19 = ssub.s32 %s11, %s18
    %p20 = scmp.eq.s32.totalorder %s19, 0
    %s22 = sadd.s32 %s21, 1
    %s23 = scalar_select %p20, %s21, %s22
    %p26 = pneg %p20
    %p27 = scmp.eq.s32.totalorder %s11, 1
    %p28 = por %p26, %p27
    %p29 = scmp.ne.s32.totalorder %s21, %s24
    %p30 = scmp.eq.s32.totalorder %s11, 0
    %p31 = por %p29, %p30
    %p32 = scmp.ne.s32.totalorder %s21, %s24
    %p33 = scmp.eq.s32.totalorder %s16, 1
    %p34 = por %p32, %p33
    %p35 = scmp.ne.s32.totalorder %s24, %s25
    %p36 = scmp.eq.s32.totalorder %s16, 0
    %p37 = por %p35, %p36
    %p38 = scmp.ne.s32.totalorder %s24, %s25
    %p39 = scmp.eq.s32.totalorder %s17, 1
    %p40 = por %p38, %p39
    %p42 = scmp.ne.s32.totalorder %s25, %s41
    %p43 = scmp.eq.s32.totalorder %s17, 0
    %p44 = por %p42, %p43
    %s46 = sadd.s32 %s45, 1
    %p49 = scmp.eq.s32.totalorder %s11, 1
    %p50 = scmp.ne.s32.totalorder %s45, %s47
    %p51 = scmp.eq.s32.totalorder %s11, 0
    %p52 = por %p50, %p51
    %p53 = scmp.ne.s32.totalorder %s45, %s47
    %p54 = scmp.eq.s32.totalorder %s16, 1
    %p55 = por %p53, %p54
    %p56 = scmp.ne.s32.totalorder %s47, %s48
    %p57 = scmp.eq.s32.totalorder %s16, 0
    %p58 = por %p56, %p57
    %p59 = scmp.ne.s32.totalorder %s47, %s48
    %p60 = scmp.eq.s32.totalorder %s17, 1
    %p61 = por %p59, %p60
    %p63 = scmp.ne.s32.totalorder %s48, %s62
    %p64 = scmp.eq.s32.totalorder %s17, 0
    %p65 = por %p63, %p64
    %s67 = sadd.s32 %s66, 1
    %p70 = scmp.eq.s32.totalorder %s11, 1
    %p71 = scmp.ne.s32.totalorder %s66, %s68
    %p72 = scmp.eq.s32.totalorder %s11, 0
    %p73 = por %p71, %p72
    %p74 = scmp.ne.s32.totalorder %s66, %s68
    %p75 = scmp.eq.s32.totalorder %s16, 1
    %p76 = por %p74, %p75
    %p77 = scmp.ne.s32.totalorder %s68, %s69
    %p78 = scmp.eq.s32.totalorder %s16, 0
    %p79 = por %p77, %p78
    %p80 = scmp.ne.s32.totalorder %s68, %s69
    %p81 = scmp.eq.s32.totalorder %s17, 1
    %p82 = por %p80, %p81
    %p84 = scmp.ne.s32.totalorder %s69, %s83
    %p85 = scmp.eq.s32.totalorder %s17, 0
    %p86 = por %p84, %p85
    %s88 = sadd.s32 %s87, 1
    %p91 = scmp.eq.s32.totalorder %s11, 1
    %p92 = scmp.ne.s32.totalorder %s87, %s89
    %p93 = scmp.eq.s32.totalorder %s11, 0
    %p94 = por %p92, %p93
    %p95 = scmp.ne.s32.totalorder %s87, %s89
    %p96 = scmp.eq.s32.totalorder %s16, 1
    %p97 = por %p95, %p96
    %p98 = scmp.ne.s32.totalorder %s89, %s90
    %p99 = scmp.eq.s32.totalorder %s16, 0
    %p100 = por %p98, %p99
    %p101 = scmp.ne.s32.totalorder %s89, %s90
    %p102 = scmp.eq.s32.totalorder %s17, 1
    %p103 = por %p101, %p102
    %p105 = scmp.ne.s32.totalorder %s90, %s104
    %p106 = scmp.eq.s32.totalorder %s17, 0
    %p107 = por %p105, %p106
    %s109 = sadd.s32 %s108, 1
    %p112 = scmp.eq.s32.totalorder %s11, 1
    %p113 = scmp.ne.s32.totalorder %s108, %s110
    %p114 = scmp.eq.s32.totalorder %s11, 0
    %p115 = por %p113, %p114
    %p116 = scmp.ne.s32.totalorder %s108, %s110
    %p117 = scmp.eq.s32.totalorder %s16, 1
    %p118 = por %p116, %p117
    %p119 = scmp.ne.s32.totalorder %s110, %s111
    %p120 = scmp.eq.s32.totalorder %s16, 0
    %p121 = por %p119, %p120
    %p122 = scmp.ne.s32.totalorder %s110, %s111
    %p123 = scmp.eq.s32.totalorder %s17, 1
    %p124 = por %p122, %p123
    %p126 = scmp.ne.s32.totalorder %s111, %s125
    %p127 = scmp.eq.s32.totalorder %s17, 0
    %p128 = por %p126, %p127
    %s129 = ssub.s32 %s11, %s18
    %p130 = scmp.eq.s32.totalorder %s129, 0
    %s132 = sadd.s32 %s131, 1
    %s133 = scalar_select %p130, %s131, %s132
    %p136 = pneg %p130
    %p137 = scmp.eq.s32.totalorder %s11, 1
    %p138 = por %p136, %p137
    %p139 = scmp.ne.s32.totalorder %s131, %s134
    %p140 = scmp.eq.s32.totalorder %s11, 0
    %p141 = por %p139, %p140
    %p142 = scmp.ne.s32.totalorder %s131, %s134
    %p143 = scmp.eq.s32.totalorder %s16, 1
    %p144 = por %p142, %p143
    %p145 = scmp.ne.s32.totalorder %s134, %s135
    %p146 = scmp.eq.s32.totalorder %s16, 0
    %p147 = por %p145, %p146
    %p148 = scmp.ne.s32.totalorder %s134, %s135
    %p149 = scmp.eq.s32.totalorder %s17, 1
    %p150 = por %p148, %p149
    %p152 = scmp.ne.s32.totalorder %s135, %s151
    %p153 = scmp.eq.s32.totalorder %s17, 0
    %p154 = por %p152, %p153
    %p155 = scmp.le.s32.totalorder 1, %s11
    %p156 = scmp.lt.s32.totalorder %s11, 3
    %p157 = pnand %p155, %p156
    %p158 = pneg %p157
    // Predicated region
    $region9: #{two_layers_forward.1} parent=5 // pred_check
      _
    $region10: #{two_layers_forward.1} parent=5 // pred_check_branch
      %160 = sbr.rel (%p157) target = $region12
    $region11: #{two_layers_forward.1} parent=5 // pred_region
      %s161 = ssub.s32 %s11, 1
      // Predicated region
      $region13: #{two_layers_forward.1} parent=11 // pred_check
        %p162 = pneg %p58
      $region14: #{two_layers_forward.1} parent=11 // pred_check_branch
        %164 = sbr.rel (%p162) target = $region16
      $region15: #{two_layers_forward.1} parent=11 // pred_region
        _
      $region16: #{two_layers_forward.1} parent=11 // pred_fallthru
        _
      // Predicated region
      $region17: #{two_layers_forward.1} parent=11 // pred_check
        %p165 = pneg %p79
      $region18: #{two_layers_forward.1} parent=11 // pred_check_branch
        %167 = sbr.rel (%p165) target = $region20
      $region19: #{two_layers_forward.1} parent=11 // pred_region
        _
      $region20: #{two_layers_forward.1} parent=11 // pred_fallthru
        _
      // Predicated region
      $region21: #{two_layers_forward.1} parent=11 // pred_check
        %p168 = pneg %p100
      $region22: #{two_layers_forward.1} parent=11 // pred_check_branch
        %170 = sbr.rel (%p168) target = $region24
      $region23: #{two_layers_forward.1} parent=11 // pred_region
        _
      $region24: #{two_layers_forward.1} parent=11 // pred_fallthru
        _
      // Predicated region
      $region25: #{two_layers_forward.1} parent=11 // pred_check
        %p171 = pneg %p121
      $region26: #{two_layers_forward.1} parent=11 // pred_check_branch
        %173 = sbr.rel (%p171) target = $region28
      $region27: #{two_layers_forward.1} parent=11 // pred_region
        _
      $region28: #{two_layers_forward.1} parent=11 // pred_fallthru
        _
    $region12: #{two_layers_forward.1} parent=5 // pred_fallthru
      _
    %p174 = scmp.lt.s32.totalorder %s11, 2
    // Predicated region
    $region29: #{two_layers_forward.1} parent=5 // pred_check
      %p175 = pneg %p174
    $region30: #{two_layers_forward.1} parent=5 // pred_check_branch
      %177 = sbr.rel (%p175) target = $region32
    $region31: #{two_layers_forward.1} parent=5 // pred_region
      // Predicated region
      $region33: #{two_layers_forward.1} parent=31 // pred_check
        %p178 = pneg %p31
      $region34: #{two_layers_forward.1} parent=31 // pred_check_branch
        %180 = sbr.rel (%p178) target = $region36
      $region35: #{two_layers_forward.1} parent=31 // pred_region
        %s181 = smul.u32 32, %s11
        %p182 = scmp.lt.s32.totalorder %s181, 63
        %s183 = scalar_select %p182, %s181, 63
        %s184 = smul.addr %s183, 8
        %s185 = scalar_lea.vmem %s0, %s184
        %s186 = smul.u32 32, %s11
      $region36: #{two_layers_forward.1} parent=31 // pred_fallthru
        _
    $region32: #{two_layers_forward.1} parent=5 // pred_fallthru
      _
    %p187 = scmp.le.s32.totalorder 1, %s11
    %p188 = scmp.lt.s32.totalorder %s11, 3
    %p189 = pnand %p187, %p188
    %p190 = pneg %p189
    // Predicated region
    $region37: #{two_layers_forward.1} parent=5 // pred_check
      _
    $region38: #{two_layers_forward.1} parent=5 // pred_check_branch
      %192 = sbr.rel (%p189) target = $region40
    $region39: #{two_layers_forward.1} parent=5 // pred_region
      %s193 = ssub.s32 %s11, 1
      %s194 = smul.u32 32, %s16
      %p195 = scmp.lt.s32.totalorder %s194, 63
      %s196 = scalar_select %p195, %s194, 63
      %s197 = smul.addr %s196, 8
      %s198 = scalar_lea.vmem %s0, %s197
      %p199 = pneg %p37
      %p200 = pneg %p34
      %p201 = pneg %p58
      %p202 = pneg %p55
      %p203 = pneg %p79
      %p204 = pneg %p76
      %p205 = pneg %p100
      %p206 = pneg %p97
      %p207 = pneg %p121
      %p208 = pneg %p118
      %p209 = pneg %p147
      %p210 = pneg %p144
      %s211 = smul.u32 32, %s16
      %p212 = scmp.lt.s32.totalorder %s211, 63
      %s213 = scalar_select %p212, %s211, 63
      %s214 = smul.addr %s213, 8
      %s215 = scalar_lea.vmem %s5, %s214
      %s216 = smul.u32 32, %s16
      %p217 = scmp.lt.s32.totalorder %s216, 63
      %s218 = scalar_select %p217, %s216, 63
      %s219 = smul.addr %s218, 8
      %s220 = scalar_lea.vmem %s0, %s219
      %s221 = smul.u32 32, %s16
      %s222 = smul.u32 32, %s16
      %p223 = scmp.lt.s32.totalorder %s222, 63
      %s224 = scalar_select %p223, %s222, 63
      %s225 = smul.addr %s224, 8
      %s226 = scalar_lea.vmem %s5, %s225
      %s227 = smul.u32 32, %s16
      %v228 = vld [vmem:[%s220] sm:$0xff]
      %v229 = vld [vmem:[%s220 + $0x8] sm:$0xff]
      %v230 = vld [vmem:[%s220 + $0x10] sm:$0xff]
      %v231 = vld [vmem:[%s220 + $0x18] sm:$0xff]
      %v232 = vld [vmem:[%s220 + $0x20] sm:$0xff]
      %v233 = vld [vmem:[%s220 + $0x28] sm:$0xff]
      %v234 = vld [vmem:[%s220 + $0x30] sm:$0xff]
      %v235 = vld [vmem:[%s220 + $0x38] sm:$0xff]
      %v236 = vld [vmem:[%s220 + $0x40] sm:$0xff]
      %v237 = vld [vmem:[%s220 + $0x48] sm:$0xff]
      %v238 = vld [vmem:[%s220 + $0x50] sm:$0xff]
      %v239 = vld [vmem:[%s220 + $0x58] sm:$0xff]
      %v240 = vld [vmem:[%s220 + $0x60] sm:$0xff]
      %v241 = vld [vmem:[%s220 + $0x68] sm:$0xff]
      %v242 = vld [vmem:[%s220 + $0x70] sm:$0xff]
      %v243 = vld [vmem:[%s220 + $0x78] sm:$0xff]
      %v244 = vld [vmem:[%s220 + $0x80] sm:$0xff]
      %v245 = vld [vmem:[%s220 + $0x88] sm:$0xff]
      %v246 = vld [vmem:[%s220 + $0x90] sm:$0xff]
      %v247 = vld [vmem:[%s220 + $0x98] sm:$0xff]
      %v248 = vld [vmem:[%s220 + $0xa0] sm:$0xff]
      %v249 = vld [vmem:[%s220 + $0xa8] sm:$0xff]
      %v250 = vld [vmem:[%s220 + $0xb0] sm:$0xff]
      %v251 = vld [vmem:[%s220 + $0xb8] sm:$0xff]
      %v252 = vld [vmem:[%s220 + $0xc0] sm:$0xff]
      %v253 = vld [vmem:[%s220 + $0xc8] sm:$0xff]
      %v254 = vld [vmem:[%s220 + $0xd0] sm:$0xff]
      %v255 = vld [vmem:[%s220 + $0xd8] sm:$0xff]
      %v256 = vld [vmem:[%s220 + $0xe0] sm:$0xff]
      %v257 = vld [vmem:[%s220 + $0xe8] sm:$0xff]
      %v258 = vld [vmem:[%s220 + $0xf0] sm:$0xff]
      %v259 = vld [vmem:[%s220 + $0xf8] sm:$0xff]
      %v260 = vld [vmem:[%s1] sm:$0xff]
      %v261 = vld [vmem:[%s1 + $0x8] sm:$0xff]
      %v262 = vld [vmem:[%s1 + $0x10] sm:$0xff]
      %v263 = vld [vmem:[%s1 + $0x18] sm:$0xff]
      %v264 = vld [vmem:[%s2] sm:$0x1]
      %v266 = vlaneseq
      %v267 = vshrl.u32 %v266, 7
      %v268 = vsub.s32 0, %v267
      %v269 = vrot.slane %v264, %v268
      %vm271 = vcmask 261120
      %v273 = vsel %vm271, %v228, 0
      %v276 = vsel %vm271, %v229, 0
      %v279 = vsel %vm271, %v230, 0
      %v282 = vsel %vm271, %v231, 0
      %v285 = vsel %vm271, %v232, 0
      %v288 = vsel %vm271, %v233, 0
      %v291 = vsel %vm271, %v234, 0
      %v294 = vsel %vm271, %v235, 0
      %v297 = vsel %vm271, %v236, 0
      %v300 = vsel %vm271, %v237, 0
      %v303 = vsel %vm271, %v238, 0
      %v306 = vsel %vm271, %v239, 0
      %v309 = vsel %vm271, %v240, 0
      %v312 = vsel %vm271, %v241, 0
      %v315 = vsel %vm271, %v242, 0
      %v318 = vsel %vm271, %v243, 0
      %v321 = vsel %vm271, %v244, 0
      %v324 = vsel %vm271, %v245, 0
      %v327 = vsel %vm271, %v246, 0
      %v330 = vsel %vm271, %v247, 0
      %v333 = vsel %vm271, %v248, 0
      %v336 = vsel %vm271, %v249, 0
      %v339 = vsel %vm271, %v250, 0
      %v342 = vsel %vm271, %v251, 0
      %v345 = vsel %vm271, %v252, 0
      %v348 = vsel %vm271, %v253, 0
      %v351 = vsel %vm271, %v254, 0
      %v354 = vsel %vm271, %v255, 0
      %v357 = vsel %vm271, %v256, 0
      %v360 = vsel %vm271, %v257, 0
      %v363 = vsel %vm271, %v258, 0
      %v366 = vsel %vm271, %v259, 0
      %368 = vmatprep.subr.mxu0 0.0
      %369 = vmatpush1.msra.mxu0 %v260
      %370 = vmatprep.subr.mxu0 0.0
      %371 = vmatpush1.msra.mxu0 %v261
      %372 = vmatprep.subr.mxu0 0.0
      %373 = vmatpush1.msra.mxu0 %v262
      %374 = vmatprep.subr.mxu0 0.0
      %375 = vmatpush1.msra.mxu0 %v263
      %376 = vmatprep.subr.mxu0 0.0
      %377 = vmatpush1.msra.mxu0 0.0
      %378 = vmatprep.subr.mxu0 0.0
      %379 = vmatpush1.msra.mxu0 0.0
      %380 = vmatprep.subr.mxu0 0.0
      %381 = vmatpush1.msra.mxu0 0.0
      %382 = vmatprep.subr.mxu0 0.0
      %383 = vmatpush1.msra.mxu0 0.0
      %384 = vmatprep.subr.mxu0 0.0
      %385 = vmatpush1.msra.mxu0 0.0
      %386 = vmatprep.subr.mxu0 0.0
      %387 = vmatpush1.msra.mxu0 0.0
      %388 = vmatprep.subr.mxu0 0.0
      %389 = vmatpush1.msra.mxu0 0.0
      %390 = vmatprep.subr.mxu0 0.0
      %391 = vmatpush1.msra.mxu0 0.0
      %392 = vmatprep.subr.mxu0 0.0
      %393 = vmatpush1.msra.mxu0 0.0
      %394 = vmatprep.subr.mxu0 0.0
      %395 = vmatpush1.msra.mxu0 0.0
      %396 = vmatprep.subr.mxu0 0.0
      %397 = vmatpush1.msra.mxu0 0.0
      %398 = vmatprep.subr.mxu0 0.0
      %399 = vmatpush1.msra.mxu0 0.0
      %400 = vmatprep.subr.mxu0 0.0
      %401 = vmatpush1.msra.mxu0 0.0
      %402 = vmatprep.subr.mxu0 0.0
      %403 = vmatpush1.msra.mxu0 0.0
      %404 = vmatprep.subr.mxu0 0.0
      %405 = vmatpush1.msra.mxu0 0.0
      %406 = vmatprep.subr.mxu0 0.0
      %407 = vmatpush1.msra.mxu0 0.0
      %408 = vmatprep.subr.mxu0 0.0
      %409 = vmatpush1.msra.mxu0 0.0
      %410 = vmatprep.subr.mxu0 0.0
      %411 = vmatpush1.msra.mxu0 0.0
      %412 = vmatprep.subr.mxu0 0.0
      %413 = vmatpush1.msra.mxu0 0.0
      %414 = vmatprep.subr.mxu0 0.0
      %415 = vmatpush1.msra.mxu0 0.0
      %416 = vmatprep.subr.mxu0 0.0
      %417 = vmatpush1.msra.mxu0 0.0
      %418 = vmatprep.subr.mxu0 0.0
      %419 = vmatpush1.msra.mxu0 0.0
      %420 = vmatprep.subr.mxu0 0.0
      %421 = vmatpush1.msra.mxu0 0.0
      %422 = vmatprep.subr.mxu0 0.0
      %423 = vmatpush1.msra.mxu0 0.0
      %424 = vmatprep.subr.mxu0 0.0
      %425 = vmatpush1.msra.mxu0 0.0
      %426 = vmatprep.subr.mxu0 0.0
      %427 = vmatpush1.msra.mxu0 0.0
      %428 = vmatprep.subr.mxu0 0.0
      %429 = vmatpush1.msra.mxu0 0.0
      %430 = vmatprep.subr.mxu0 0.0
      %431 = vmatpush1.msra.mxu0 0.0
      %432 = vmatprep.mubr.f32.mxu0 0.0
      %433 = vmatmul.mubr.f32.gmra.mrb[0].mxu0 %v273
      %v434 = vpop.f32.mrb[0].mxu0
      %v435 = vadd.f32 %v269, %v434
      %v436 = vpop.f32.mrb[0].mxu0
      %437 = vmatprep.mubr.f32.mxu0 0.0
      %438 = vmatmul.mubr.f32.gmra.mrb[0].mxu0 %v276
      %v439 = vpop.f32.mrb[0].mxu0
      %v440 = vadd.f32 %v269, %v439
      %v441 = vpop.f32.mrb[0].mxu0
      %442 = vmatprep.mubr.f32.mxu0 0.0
      %443 = vmatmul.mubr.f32.gmra.mrb[0].mxu0 %v279
      %v444 = vpop.f32.mrb[0].mxu0
      %v445 = vadd.f32 %v269, %v444
      %v446 = vpop.f32.mrb[0].mxu0
      %447 = vmatprep.mubr.f32.mxu0 0.0
      %448 = vmatmul.mubr.f32.gmra.mrb[0].mxu0 %v282
      %v449 = vpop.f32.mrb[0].mxu0
      %v450 = vadd.f32 %v269, %v449
      %v451 = vpop.f32.mrb[0].mxu0
      %452 = vmatprep.mubr.f32.mxu0 0.0
      %453 = vmatmul.mubr.f32.gmra.mrb[0].mxu0 %v285
      %v454 = vpop.f32.mrb[0].mxu0
      %v455 = vadd.f32 %v269, %v454
      %v456 = vpop.f32.mrb[0].mxu0
      %457 = vmatprep.mubr.f32.mxu0 0.0
      %458 = vmatmul.mubr.f32.gmra.mrb[0].mxu0 %v288
      %v459 = vpop.f32.mrb[0].mxu0
      %v460 = vadd.f32 %v269, %v459
      %v461 = vpop.f32.mrb[0].mxu0
      %462 = vmatprep.mubr.f32.mxu0 0.0
      %463 = vmatmul.mubr.f32.gmra.mrb[0].mxu0 %v291
      %v464 = vpop.f32.mrb[0].mxu0
      %v465 = vadd.f32 %v269, %v464
      %v466 = vpop.f32.mrb[0].mxu0
      %467 = vmatprep.mubr.f32.mxu0 0.0
      %468 = vmatmul.mubr.f32.gmra.mrb[0].mxu0 %v294
      %v469 = vpop.f32.mrb[0].mxu0
      %v470 = vadd.f32 %v269, %v469
      %v471 = vpop.f32.mrb[0].mxu0
      %472 = vmatprep.mubr.f32.mxu0 0.0
      %473 = vmatmul.mubr.f32.gmra.mrb[0].mxu0 %v297
      %v474 = vpop.f32.mrb[0].mxu0
      %v475 = vadd.f32 %v269, %v474
      %v476 = vpop.f32.mrb[0].mxu0
      %477 = vmatprep.mubr.f32.mxu0 0.0
      %478 = vmatmul.mubr.f32.gmra.mrb[0].mxu0 %v300
      %v479 = vpop.f32.mrb[0].mxu0
      %v480 = vadd.f32 %v269, %v479
      %v481 = vpop.f32.mrb[0].mxu0
      %482 = vmatprep.mubr.f32.mxu0 0.0
      %483 = vmatmul.mubr.f32.gmra.mrb[0].mxu0 %v303
      %v484 = vpop.f32.mrb[0].mxu0
      %v485 = vadd.f32 %v269, %v484
      %v486 = vpop.f32.mrb[0].mxu0
      %487 = vmatprep.mubr.f32.mxu0 0.0
      %488 = vmatmul.mubr.f32.gmra.mrb[0].mxu0 %v306
      %v489 = vpop.f32.mrb[0].mxu0
      %v490 = vadd.f32 %v269, %v489
      %v491 = vpop.f32.mrb[0].mxu0
      %492 = vmatprep.mubr.f32.mxu0 0.0
      %493 = vmatmul.mubr.f32.gmra.mrb[0].mxu0 %v309
      %v494 = vpop.f32.mrb[0].mxu0
      %v495 = vadd.f32 %v269, %v494
      %v496 = vpop.f32.mrb[0].mxu0
      %497 = vmatprep.mubr.f32.mxu0 0.0
      %498 = vmatmul.mubr.f32.gmra.mrb[0].mxu0 %v312
      %v499 = vpop.f32.mrb[0].mxu0
      %v500 = vadd.f32 %v269, %v499
      %v501 = vpop.f32.mrb[0].mxu0
      %502 = vmatprep.mubr.f32.mxu0 0.0
      %503 = vmatmul.mubr.f32.gmra.mrb[0].mxu0 %v315
      %v504 = vpop.f32.mrb[0].mxu0
      %v505 = vadd.f32 %v269, %v504
      %v506 = vpop.f32.mrb[0].mxu0
      %507 = vmatprep.mubr.f32.mxu0 0.0
      %508 = vmatmul.mubr.f32.gmra.mrb[0].mxu0 %v318
      %v509 = vpop.f32.mrb[0].mxu0
      %v510 = vadd.f32 %v269, %v509
      %v511 = vpop.f32.mrb[0].mxu0
      %512 = vmatprep.mubr.f32.mxu0 0.0
      %513 = vmatmul.mubr.f32.gmra.mrb[0].mxu0 %v321
      %v514 = vpop.f32.mrb[0].mxu0
      %v515 = vadd.f32 %v269, %v514
      %v516 = vpop.f32.mrb[0].mxu0
      %517 = vmatprep.mubr.f32.mxu0 0.0
      %518 = vmatmul.mubr.f32.gmra.mrb[0].mxu0 %v324
      %v519 = vpop.f32.mrb[0].mxu0
      %v520 = vadd.f32 %v269, %v519
      %v521 = vpop.f32.mrb[0].mxu0
      %522 = vmatprep.mubr.f32.mxu0 0.0
      %523 = vmatmul.mubr.f32.gmra.mrb[0].mxu0 %v327
      %v524 = vpop.f32.mrb[0].mxu0
      %v525 = vadd.f32 %v269, %v524
      %v526 = vpop.f32.mrb[0].mxu0
      %527 = vmatprep.mubr.f32.mxu0 0.0
      %528 = vmatmul.mubr.f32.gmra.mrb[0].mxu0 %v330
      %v529 = vpop.f32.mrb[0].mxu0
      %v530 = vadd.f32 %v269, %v529
      %v531 = vpop.f32.mrb[0].mxu0
      %532 = vmatprep.mubr.f32.mxu0 0.0
      %533 = vmatmul.mubr.f32.gmra.mrb[0].mxu0 %v333
      %v534 = vpop.f32.mrb[0].mxu0
      %v535 = vadd.f32 %v269, %v534
      %v536 = vpop.f32.mrb[0].mxu0
      %537 = vmatprep.mubr.f32.mxu0 0.0
      %538 = vmatmul.mubr.f32.gmra.mrb[0].mxu0 %v336
      %v539 = vpop.f32.mrb[0].mxu0
      %v540 = vadd.f32 %v269, %v539
      %v541 = vpop.f32.mrb[0].mxu0
      %542 = vmatprep.mubr.f32.mxu0 0.0
      %543 = vmatmul.mubr.f32.gmra.mrb[0].mxu0 %v339
      %v544 = vpop.f32.mrb[0].mxu0
      %v545 = vadd.f32 %v269, %v544
      %v546 = vpop.f32.mrb[0].mxu0
      %547 = vmatprep.mubr.f32.mxu0 0.0
      %548 = vmatmul.mubr.f32.gmra.mrb[0].mxu0 %v342
      %v549 = vpop.f32.mrb[0].mxu0
      %v550 = vadd.f32 %v269, %v549
      %v551 = vpop.f32.mrb[0].mxu0
      %552 = vmatprep.mubr.f32.mxu0 0.0
      %553 = vmatmul.mubr.f32.gmra.mrb[0].mxu0 %v345
      %v554 = vpop.f32.mrb[0].mxu0
      %v555 = vadd.f32 %v269, %v554
      %v556 = vpop.f32.mrb[0].mxu0
      %557 = vmatprep.mubr.f32.mxu0 0.0
      %558 = vmatmul.mubr.f32.gmra.mrb[0].mxu0 %v348
      %v559 = vpop.f32.mrb[0].mxu0
      %v560 = vadd.f32 %v269, %v559
      %v561 = vpop.f32.mrb[0].mxu0
      %562 = vmatprep.mubr.f32.mxu0 0.0
      %563 = vmatmul.mubr.f32.gmra.mrb[0].mxu0 %v351
      %v564 = vpop.f32.mrb[0].mxu0
      %v565 = vadd.f32 %v269, %v564
      %v566 = vpop.f32.mrb[0].mxu0
      %567 = vmatprep.mubr.f32.mxu0 0.0
      %568 = vmatmul.mubr.f32.gmra.mrb[0].mxu0 %v354
      %v569 = vpop.f32.mrb[0].mxu0
      %v570 = vadd.f32 %v269, %v569
      %v571 = vpop.f32.mrb[0].mxu0
      %572 = vmatprep.mubr.f32.mxu0 0.0
      %573 = vmatmul.mubr.f32.gmra.mrb[0].mxu0 %v357
      %v574 = vpop.f32.mrb[0].mxu0
      %v575 = vadd.f32 %v269, %v574
      %v576 = vpop.f32.mrb[0].mxu0
      %577 = vmatprep.mubr.f32.mxu0 0.0
      %578 = vmatmul.mubr.f32.gmra.mrb[0].mxu0 %v360
      %v579 = vpop.f32.mrb[0].mxu0
      %v580 = vadd.f32 %v269, %v579
      %v581 = vpop.f32.mrb[0].mxu0
      %582 = vmatprep.mubr.f32.mxu0 0.0
      %583 = vmatmul.mubr.f32.gmra.mrb[0].mxu0 %v363
      %v584 = vpop.f32.mrb[0].mxu0
      %v585 = vadd.f32 %v269, %v584
      %v586 = vpop.f32.mrb[0].mxu0
      %587 = vmatprep.mubr.f32.mxu0 0.0
      %588 = vmatmul.mubr.f32.gmra.mrb[0].mxu0 %v366
      %v589 = vpop.f32.mrb[0].mxu0
      %v590 = vadd.f32 %v269, %v589
      %v591 = vpop.f32.mrb[0].mxu0
      %592 = vdwg.mxu0
      %v593 = vmax.f32 %v435, 0.0
      %v594 = vmax.f32 %v440, 0.0
      %v595 = vmax.f32 %v445, 0.0
      %v596 = vmax.f32 %v450, 0.0
      %v597 = vmax.f32 %v455, 0.0
      %v598 = vmax.f32 %v460, 0.0
      %v599 = vmax.f32 %v465, 0.0
      %v600 = vmax.f32 %v470, 0.0
      %v601 = vmax.f32 %v475, 0.0
      %v602 = vmax.f32 %v480, 0.0
      %v603 = vmax.f32 %v485, 0.0
      %v604 = vmax.f32 %v490, 0.0
      %v605 = vmax.f32 %v495, 0.0
      %v606 = vmax.f32 %v500, 0.0
      %v607 = vmax.f32 %v505, 0.0
      %v608 = vmax.f32 %v510, 0.0
      %v609 = vmax.f32 %v515, 0.0
      %v610 = vmax.f32 %v520, 0.0
      %v611 = vmax.f32 %v525, 0.0
      %v612 = vmax.f32 %v530, 0.0
      %v613 = vmax.f32 %v535, 0.0
      %v614 = vmax.f32 %v540, 0.0
      %v615 = vmax.f32 %v545, 0.0
      %v616 = vmax.f32 %v550, 0.0
      %v617 = vmax.f32 %v555, 0.0
      %v618 = vmax.f32 %v560, 0.0
      %v619 = vmax.f32 %v565, 0.0
      %v620 = vmax.f32 %v570, 0.0
      %v621 = vmax.f32 %v575, 0.0
      %v622 = vmax.f32 %v580, 0.0
      %v623 = vmax.f32 %v585, 0.0
      %v624 = vmax.f32 %v590, 0.0
      %v625 = vld [vmem:[%s3] sm:$0xff]
      %v626 = vld [vmem:[%s3 + $0x8] sm:$0xff]
      %v627 = vld [vmem:[%s3 + $0x10] sm:$0xff]
      %v628 = vld [vmem:[%s3 + $0x18] sm:$0xff]
      %v629 = vld [vmem:[%s3 + $0x20] sm:$0xff]
      %v630 = vld [vmem:[%s3 + $0x28] sm:$0xff]
      %v631 = vld [vmem:[%s3 + $0x30] sm:$0xff]
      %v632 = vld [vmem:[%s3 + $0x38] sm:$0xff]
      %v633 = vld [vmem:[%s3 + $0x40] sm:$0xff]
      %v634 = vld [vmem:[%s3 + $0x48] sm:$0xff]
      %v635 = vld [vmem:[%s3 + $0x50] sm:$0xff]
      %v636 = vld [vmem:[%s3 + $0x58] sm:$0xff]
      %v637 = vld [vmem:[%s3 + $0x60] sm:$0xff]
      %v638 = vld [vmem:[%s3 + $0x68] sm:$0xff]
      %v639 = vld [vmem:[%s3 + $0x70] sm:$0xff]
      %v640 = vld [vmem:[%s3 + $0x78] sm:$0xff]
      %v641 = vld [vmem:[%s4] sm:$0x1]
      %v643 = vlaneseq
      %v644 = vshrl.u32 %v643, 7
      %v645 = vsub.s32 0, %v644
      %v646 = vrot.slane %v641, %v645
      %648 = vmatprep.subr.mxu0 0.0
      %649 = vmatpush1.msra.mxu0 %v625
      %650 = vmatprep.subr.mxu0 0.0
      %651 = vmatpush1.msra.mxu0 %v626
      %652 = vmatprep.subr.mxu0 0.0
      %653 = vmatpush1.msra.mxu0 %v627
      %654 = vmatprep.subr.mxu0 0.0
      %655 = vmatpush1.msra.mxu0 %v628
      %656 = vmatprep.subr.mxu0 0.0
      %657 = vmatpush1.msra.mxu0 %v629
      %658 = vmatprep.subr.mxu0 0.0
      %659 = vmatpush1.msra.mxu0 %v630
      %660 = vmatprep.subr.mxu0 0.0
      %661 = vmatpush1.msra.mxu0 %v631
      %662 = vmatprep.subr.mxu0 0.0
      %663 = vmatpush1.msra.mxu0 %v632
      %664 = vmatprep.subr.mxu0 0.0
      %665 = vmatpush1.msra.mxu0 %v633
      %666 = vmatprep.subr.mxu0 0.0
      %667 = vmatpush1.msra.mxu0 %v634
      %668 = vmatprep.subr.mxu0 0.0
      %669 = vmatpush1.msra.mxu0 %v635
      %670 = vmatprep.subr.mxu0 0.0
      %671 = vmatpush1.msra.mxu0 %v636
      %672 = vmatprep.subr.mxu0 0.0
      %673 = vmatpush1.msra.mxu0 %v637
      %674 = vmatprep.subr.mxu0 0.0
      %675 = vmatpush1.msra.mxu0 %v638
      %676 = vmatprep.subr.mxu0 0.0
      %677 = vmatpush1.msra.mxu0 %v639
      %678 = vmatprep.subr.mxu0 0.0
      %679 = vmatpush1.msra.mxu0 %v640
      %680 = vmatprep.subr.mxu0 0.0
      %681 = vmatpush1.msra.mxu0 0.0
      %682 = vmatprep.subr.mxu0 0.0
      %683 = vmatpush1.msra.mxu0 0.0
      %684 = vmatprep.subr.mxu0 0.0
      %685 = vmatpush1.msra.mxu0 0.0
      %686 = vmatprep.subr.mxu0 0.0
      %687 = vmatpush1.msra.mxu0 0.0
      %688 = vmatprep.subr.mxu0 0.0
      %689 = vmatpush1.msra.mxu0 0.0
      %690 = vmatprep.subr.mxu0 0.0
      %691 = vmatpush1.msra.mxu0 0.0
      %692 = vmatprep.subr.mxu0 0.0
      %693 = vmatpush1.msra.mxu0 0.0
      %694 = vmatprep.subr.mxu0 0.0
      %695 = vmatpush1.msra.mxu0 0.0
      %696 = vmatprep.subr.mxu0 0.0
      %697 = vmatpush1.msra.mxu0 0.0
      %698 = vmatprep.subr.mxu0 0.0
      %699 = vmatpush1.msra.mxu0 0.0
      %700 = vmatprep.subr.mxu0 0.0
      %701 = vmatpush1.msra.mxu0 0.0
      %702 = vmatprep.subr.mxu0 0.0
      %703 = vmatpush1.msra.mxu0 0.0
      %704 = vmatprep.subr.mxu0 0.0
      %705 = vmatpush1.msra.mxu0 0.0
      %706 = vmatprep.subr.mxu0 0.0
      %707 = vmatpush1.msra.mxu0 0.0
      %708 = vmatprep.subr.mxu0 0.0
      %709 = vmatpush1.msra.mxu0 0.0
      %710 = vmatprep.subr.mxu0 0.0
      %711 = vmatpush1.msra.mxu0 0.0
      %712 = vmatprep.mubr.f32.mxu0 0.0
      %713 = vmatmul.mubr.f32.gmra.mrb[0].mxu0 %v593
      %v714 = vpop.f32.mrb[0].mxu0
      %v715 = vadd.f32 %v646, %v714
      %v716 = vpop.f32.mrb[0].mxu0
      %717 = vmatprep.mubr.f32.mxu0 0.0
      %718 = vmatmul.mubr.f32.gmra.mrb[0].mxu0 %v594
      %v719 = vpop.f32.mrb[0].mxu0
      %v720 = vadd.f32 %v646, %v719
      %v721 = vpop.f32.mrb[0].mxu0
      %722 = vmatprep.mubr.f32.mxu0 0.0
      %723 = vmatmul.mubr.f32.gmra.mrb[0].mxu0 %v595
      %v724 = vpop.f32.mrb[0].mxu0
      %v725 = vadd.f32 %v646, %v724
      %v726 = vpop.f32.mrb[0].mxu0
      %727 = vmatprep.mubr.f32.mxu0 0.0
      %728 = vmatmul.mubr.f32.gmra.mrb[0].mxu0 %v596
      %v729 = vpop.f32.mrb[0].mxu0
      %v730 = vadd.f32 %v646, %v729
      %v731 = vpop.f32.mrb[0].mxu0
      %732 = vmatprep.mubr.f32.mxu0 0.0
      %733 = vmatmul.mubr.f32.gmra.mrb[0].mxu0 %v597
      %v734 = vpop.f32.mrb[0].mxu0
      %v735 = vadd.f32 %v646, %v734
      %v736 = vpop.f32.mrb[0].mxu0
      %737 = vmatprep.mubr.f32.mxu0 0.0
      %738 = vmatmul.mubr.f32.gmra.mrb[0].mxu0 %v598
      %v739 = vpop.f32.mrb[0].mxu0
      %v740 = vadd.f32 %v646, %v739
      %v741 = vpop.f32.mrb[0].mxu0
      %742 = vmatprep.mubr.f32.mxu0 0.0
      %743 = vmatmul.mubr.f32.gmra.mrb[0].mxu0 %v599
      %v744 = vpop.f32.mrb[0].mxu0
      %v745 = vadd.f32 %v646, %v744
      %v746 = vpop.f32.mrb[0].mxu0
      %747 = vmatprep.mubr.f32.mxu0 0.0
      %748 = vmatmul.mubr.f32.gmra.mrb[0].mxu0 %v600
      %v749 = vpop.f32.mrb[0].mxu0
      %v750 = vadd.f32 %v646, %v749
      %v751 = vpop.f32.mrb[0].mxu0
      %752 = vmatprep.mubr.f32.mxu0 0.0
      %753 = vmatmul.mubr.f32.gmra.mrb[0].mxu0 %v601
      %v754 = vpop.f32.mrb[0].mxu0
      %v755 = vadd.f32 %v646, %v754
      %v756 = vpop.f32.mrb[0].mxu0
      %757 = vmatprep.mubr.f32.mxu0 0.0
      %758 = vmatmul.mubr.f32.gmra.mrb[0].mxu0 %v602
      %v759 = vpop.f32.mrb[0].mxu0
      %v760 = vadd.f32 %v646, %v759
      %v761 = vpop.f32.mrb[0].mxu0
      %762 = vmatprep.mubr.f32.mxu0 0.0
      %763 = vmatmul.mubr.f32.gmra.mrb[0].mxu0 %v603
      %v764 = vpop.f32.mrb[0].mxu0
      %v765 = vadd.f32 %v646, %v764
      %v766 = vpop.f32.mrb[0].mxu0
      %767 = vmatprep.mubr.f32.mxu0 0.0
      %768 = vmatmul.mubr.f32.gmra.mrb[0].mxu0 %v604
      %v769 = vpop.f32.mrb[0].mxu0
      %v770 = vadd.f32 %v646, %v769
      %v771 = vpop.f32.mrb[0].mxu0
      %772 = vmatprep.mubr.f32.mxu0 0.0
      %773 = vmatmul.mubr.f32.gmra.mrb[0].mxu0 %v605
      %v774 = vpop.f32.mrb[0].mxu0
      %v775 = vadd.f32 %v646, %v774
      %v776 = vpop.f32.mrb[0].mxu0
      %777 = vmatprep.mubr.f32.mxu0 0.0
      %778 = vmatmul.mubr.f32.gmra.mrb[0].mxu0 %v606
      %v779 = vpop.f32.mrb[0].mxu0
      %v780 = vadd.f32 %v646, %v779
      %v781 = vpop.f32.mrb[0].mxu0
      %782 = vmatprep.mubr.f32.mxu0 0.0
      %783 = vmatmul.mubr.f32.gmra.mrb[0].mxu0 %v607
      %v784 = vpop.f32.mrb[0].mxu0
      %v785 = vadd.f32 %v646, %v784
      %v786 = vpop.f32.mrb[0].mxu0
      %787 = vmatprep.mubr.f32.mxu0 0.0
      %788 = vmatmul.mubr.f32.gmra.mrb[0].mxu0 %v608
      %v789 = vpop.f32.mrb[0].mxu0
      %v790 = vadd.f32 %v646, %v789
      %v791 = vpop.f32.mrb[0].mxu0
      %792 = vmatprep.mubr.f32.mxu0 0.0
      %793 = vmatmul.mubr.f32.gmra.mrb[0].mxu0 %v609
      %v794 = vpop.f32.mrb[0].mxu0
      %v795 = vadd.f32 %v646, %v794
      %v796 = vpop.f32.mrb[0].mxu0
      %797 = vmatprep.mubr.f32.mxu0 0.0
      %798 = vmatmul.mubr.f32.gmra.mrb[0].mxu0 %v610
      %v799 = vpop.f32.mrb[0].mxu0
      %v800 = vadd.f32 %v646, %v799
      %v801 = vpop.f32.mrb[0].mxu0
      %802 = vmatprep.mubr.f32.mxu0 0.0
      %803 = vmatmul.mubr.f32.gmra.mrb[0].mxu0 %v611
      %v804 = vpop.f32.mrb[0].mxu0
      %v805 = vadd.f32 %v646, %v804
      %v806 = vpop.f32.mrb[0].mxu0
      %807 = vmatprep.mubr.f32.mxu0 0.0
      %808 = vmatmul.mubr.f32.gmra.mrb[0].mxu0 %v612
      %v809 = vpop.f32.mrb[0].mxu0
      %v810 = vadd.f32 %v646, %v809
      %v811 = vpop.f32.mrb[0].mxu0
      %812 = vmatprep.mubr.f32.mxu0 0.0
      %813 = vmatmul.mubr.f32.gmra.mrb[0].mxu0 %v613
      %v814 = vpop.f32.mrb[0].mxu0
      %v815 = vadd.f32 %v646, %v814
      %v816 = vpop.f32.mrb[0].mxu0
      %817 = vmatprep.mubr.f32.mxu0 0.0
      %818 = vmatmul.mubr.f32.gmra.mrb[0].mxu0 %v614
      %v819 = vpop.f32.mrb[0].mxu0
      %v820 = vadd.f32 %v646, %v819
      %v821 = vpop.f32.mrb[0].mxu0
      %822 = vmatprep.mubr.f32.mxu0 0.0
      %823 = vmatmul.mubr.f32.gmra.mrb[0].mxu0 %v615
      %v824 = vpop.f32.mrb[0].mxu0
      %v825 = vadd.f32 %v646, %v824
      %v826 = vpop.f32.mrb[0].mxu0
      %827 = vmatprep.mubr.f32.mxu0 0.0
      %828 = vmatmul.mubr.f32.gmra.mrb[0].mxu0 %v616
      %v829 = vpop.f32.mrb[0].mxu0
      %v830 = vadd.f32 %v646, %v829
      %v831 = vpop.f32.mrb[0].mxu0
      %832 = vmatprep.mubr.f32.mxu0 0.0
      %833 = vmatmul.mubr.f32.gmra.mrb[0].mxu0 %v617
      %v834 = vpop.f32.mrb[0].mxu0
      %v835 = vadd.f32 %v646, %v834
      %v836 = vpop.f32.mrb[0].mxu0
      %837 = vmatprep.mubr.f32.mxu0 0.0
      %838 = vmatmul.mubr.f32.gmra.mrb[0].mxu0 %v618
      %v839 = vpop.f32.mrb[0].mxu0
      %v840 = vadd.f32 %v646, %v839
      %v841 = vpop.f32.mrb[0].mxu0
      %842 = vmatprep.mubr.f32.mxu0 0.0
      %843 = vmatmul.mubr.f32.gmra.mrb[0].mxu0 %v619
      %v844 = vpop.f32.mrb[0].mxu0
      %v845 = vadd.f32 %v646, %v844
      %v846 = vpop.f32.mrb[0].mxu0
      %847 = vmatprep.mubr.f32.mxu0 0.0
      %848 = vmatmul.mubr.f32.gmra.mrb[0].mxu0 %v620
      %v849 = vpop.f32.mrb[0].mxu0
      %v850 = vadd.f32 %v646, %v849
      %v851 = vpop.f32.mrb[0].mxu0
      %852 = vmatprep.mubr.f32.mxu0 0.0
      %853 = vmatmul.mubr.f32.gmra.mrb[0].mxu0 %v621
      %v854 = vpop.f32.mrb[0].mxu0
      %v855 = vadd.f32 %v646, %v854
      %v856 = vpop.f32.mrb[0].mxu0
      %857 = vmatprep.mubr.f32.mxu0 0.0
      %858 = vmatmul.mubr.f32.gmra.mrb[0].mxu0 %v622
      %v859 = vpop.f32.mrb[0].mxu0
      %v860 = vadd.f32 %v646, %v859
      %v861 = vpop.f32.mrb[0].mxu0
      %862 = vmatprep.mubr.f32.mxu0 0.0
      %863 = vmatmul.mubr.f32.gmra.mrb[0].mxu0 %v623
      %v864 = vpop.f32.mrb[0].mxu0
      %v865 = vadd.f32 %v646, %v864
      %v866 = vpop.f32.mrb[0].mxu0
      %867 = vmatprep.mubr.f32.mxu0 0.0
      %868 = vmatmul.mubr.f32.gmra.mrb[0].mxu0 %v624
      %v869 = vpop.f32.mrb[0].mxu0
      %v870 = vadd.f32 %v646, %v869
      %v871 = vpop.f32.mrb[0].mxu0
      %872 = vdwg.mxu0
      %vm873 = vcmask 64512
      %874 = vst.msk [vmem:[%s226] sm:$0xff] %vm873, %v715
      %875 = vst.msk [vmem:[%s226 + $0x8] sm:$0xff] %vm873, %v720
      %876 = vst.msk [vmem:[%s226 + $0x10] sm:$0xff] %vm873, %v725
      %877 = vst.msk [vmem:[%s226 + $0x18] sm:$0xff] %vm873, %v730
      %878 = vst.msk [vmem:[%s226 + $0x20] sm:$0xff] %vm873, %v735
      %879 = vst.msk [vmem:[%s226 + $0x28] sm:$0xff] %vm873, %v740
      %880 = vst.msk [vmem:[%s226 + $0x30] sm:$0xff] %vm873, %v745
      %881 = vst.msk [vmem:[%s226 + $0x38] sm:$0xff] %vm873, %v750
      %882 = vst.msk [vmem:[%s226 + $0x40] sm:$0xff] %vm873, %v755
      %883 = vst.msk [vmem:[%s226 + $0x48] sm:$0xff] %vm873, %v760
      %884 = vst.msk [vmem:[%s226 + $0x50] sm:$0xff] %vm873, %v765
      %885 = vst.msk [vmem:[%s226 + $0x58] sm:$0xff] %vm873, %v770
      %886 = vst.msk [vmem:[%s226 + $0x60] sm:$0xff] %vm873, %v775
      %887 = vst.msk [vmem:[%s226 + $0x68] sm:$0xff] %vm873, %v780
      %888 = vst.msk [vmem:[%s226 + $0x70] sm:$0xff] %vm873, %v785
      %889 = vst.msk [vmem:[%s226 + $0x78] sm:$0xff] %vm873, %v790
      %890 = vst.msk [vmem:[%s226 + $0x80] sm:$0xff] %vm873, %v795
      %891 = vst.msk [vmem:[%s226 + $0x88] sm:$0xff] %vm873, %v800
      %892 = vst.msk [vmem:[%s226 + $0x90] sm:$0xff] %vm873, %v805
      %893 = vst.msk [vmem:[%s226 + $0x98] sm:$0xff] %vm873, %v810
      %894 = vst.msk [vmem:[%s226 + $0xa0] sm:$0xff] %vm873, %v815
      %895 = vst.msk [vmem:[%s226 + $0xa8] sm:$0xff] %vm873, %v820
      %896 = vst.msk [vmem:[%s226 + $0xb0] sm:$0xff] %vm873, %v825
      %897 = vst.msk [vmem:[%s226 + $0xb8] sm:$0xff] %vm873, %v830
      %898 = vst.msk [vmem:[%s226 + $0xc0] sm:$0xff] %vm873, %v835
      %899 = vst.msk [vmem:[%s226 + $0xc8] sm:$0xff] %vm873, %v840
      %900 = vst.msk [vmem:[%s226 + $0xd0] sm:$0xff] %vm873, %v845
      %901 = vst.msk [vmem:[%s226 + $0xd8] sm:$0xff] %vm873, %v850
      %902 = vst.msk [vmem:[%s226 + $0xe0] sm:$0xff] %vm873, %v855
      %903 = vst.msk [vmem:[%s226 + $0xe8] sm:$0xff] %vm873, %v860
      %904 = vst.msk [vmem:[%s226 + $0xf0] sm:$0xff] %vm873, %v865
      %905 = vst.msk [vmem:[%s226 + $0xf8] sm:$0xff] %vm873, %v870
      %s906 = smul.u32 32, %s16
      %p907 = scmp.lt.s32.totalorder %s906, 63
      %s908 = scalar_select %p907, %s906, 63
      %s909 = smul.addr %s908, 8
      %s910 = scalar_lea.vmem %s5, %s909
      // Predicated region
      $region41: #{two_layers_forward.1} parent=39 // pred_check
        %p911 = pneg %p144
      $region42: #{two_layers_forward.1} parent=39 // pred_check_branch
        %913 = sbr.rel (%p911) target = $region44
      $region43: #{two_layers_forward.1} parent=39 // pred_region
        %s914 = smul.u32 32, %s16
      $region44: #{two_layers_forward.1} parent=39 // pred_fallthru
        _
    $region40: #{two_layers_forward.1} parent=5 // pred_fallthru
      _
    %p915 = scmp.le.s32.totalorder 2, %s11
    // Predicated region
    $region45: #{two_layers_forward.1} parent=5 // pred_check
      %p916 = pneg %p915
    $region46: #{two_layers_forward.1} parent=5 // pred_check_branch
      %918 = sbr.rel (%p916) target = $region48
    $region47: #{two_layers_forward.1} parent=5 // pred_region
      %s919 = ssub.s32 %s11, 2
      // Predicated region
      $region49: #{two_layers_forward.1} parent=47 // pred_check
        %p920 = pneg %p150
      $region50: #{two_layers_forward.1} parent=47 // pred_check_branch
        %922 = sbr.rel (%p920) target = $region52
      $region51: #{two_layers_forward.1} parent=47 // pred_region
        %s923 = smul.u32 32, %s17
        %p924 = scmp.lt.s32.totalorder %s923, 63
        %s925 = scalar_select %p924, %s923, 63
        %s926 = smul.addr %s925, 8
        %s927 = scalar_lea.vmem %s5, %s926
      $region52: #{two_layers_forward.1} parent=47 // pred_fallthru
        _
    $region48: #{two_layers_forward.1} parent=5 // pred_fallthru
      _
  $region6: #{two_layers_forward.1} parent=0 // loop_footer
    %s15 = sadd.s32 1, %s11
  $region7: #{two_layers_forward.1} parent=0 // loop_footer_branch
    %10 = sbr.rel target = $region3
  $region8: #{two_layers_forward.1} parent=0 // loop_exit
    _

</llo_original>
